<compile_context>
chip_gen: v7x
topology: tpu7x:2x2x1
jax: 0.10.0
libtpu: 0.0.40
codegen_flags: <defaults>
</compile_context>

<pallas_src>
import functools

import jax
import jax.numpy as jnp
from jax.experimental import pallas as pl
from jax.experimental.pallas import tpu as pltpu


def _round_up(x, m):
    return ((x + m - 1) // m) * m


def _choose_batch_tile(batch, block_b):
    """Pick the per-step batch tile (static Python ints)."""
    # bf16 packs 2 rows per sublane -> keep the tile a multiple of 16.
    tb = min(block_b, _round_up(batch, 16))
    # v7x has 2 TensorCores: keep >=2 (prefer 4) grid steps so the "parallel"
    # batch axis can be sharded across both, as long as tiles stay >=256 rows
    # (per-step overhead stays amortized). Harmless on single-TC v5e/v6e.
    for parts in (4, 2):
        cand = _round_up(pl.cdiv(batch, parts), 128)
        if cand >= 256:
            tb = min(tb, cand)
            break
    if tb < batch:
        # More than one grid step: keep the (1, TB) output block lane-aligned.
        tb = _round_up(tb, 128)
    return tb


def _mlp_kernel(x_ref, w1_ref, b1_ref, w2_ref, b2_ref, w3_ref, b3_ref, o_ref):
    # In-kernel cast of the streamed activations to the weights' compute dtype
    # (keeps x HBM traffic at its native width; MXU accumulates in f32).
    x = x_ref[...].astype(w1_ref.dtype)

    # fc1 + ReLU (MXU matmul, f32 accumulation; bias/ReLU on the VPU in f32).
    h1 = jnp.dot(x, w1_ref[...], preferred_element_type=jnp.float32)
    h1 = jnp.maximum(h1 + b1_ref[...], 0.0)

    # fc2 + ReLU (H2 zero-padded to 128 -> lane-dense hidden; numerically exact).
    h2 = jnp.dot(h1.astype(w2_ref.dtype), w2_ref[...],
                 preferred_element_type=jnp.float32)
    h2 = jnp.maximum(h2 + b2_ref[...], 0.0)

    # fc3: out_features == 1 -> VPU multiply + lane reduction (skip a degenerate
    # N=1 MXU matmul). Result is stored lane-dense as a (1, TB) row.
    out = jnp.sum(h2 * w3_ref[...], axis=-1) + b3_ref[0]        # (TB,) f32
    o_ref[...] = out[None, :].astype(o_ref.dtype)


def prepare_params(params, compute_dtype=jnp.float32):
    """One-time parameter preprocessing (hoisted off the per-call hot path).

    - zero-pads the H2=64 hidden dim to 128 (exact: ReLU(0)=0, zero w3 rows add 0)
    - casts the MXU weights (w1, w2) to `compute_dtype`
    - keeps biases and the fc3 row in f32 (VPU math stays f32, incl. on v5e)
    - reshapes b3 into a (1,) SMEM scalar
    """
    w1, b1 = params["w1"], params["b1"]
    w2, b2 = params["w2"], params["b2"]
    w3, b3 = params["w3"], params["b3"]

    h2 = w2.shape[1]
    pad = _round_up(h2, 128) - h2

    return {
        "w1": w1.astype(compute_dtype),                                       # (D, 128)
        "b1": b1.reshape(1, -1).astype(jnp.float32),                          # (1, 128)
        "w2": jnp.pad(w2, ((0, 0), (0, pad))).astype(compute_dtype),          # (128, 128)
        "b2": jnp.pad(b2.reshape(1, -1), ((0, 0), (0, pad))).astype(jnp.float32),
        "w3": jnp.pad(w3.reshape(1, -1), ((0, 0), (0, pad))).astype(jnp.float32),
        "b3": jnp.reshape(b3, (1,)).astype(jnp.float32),                      # SMEM scalar
    }


@functools.partial(jax.jit, static_argnames=("block_b",))
def simple_model_forward(x, params, *, block_b=2048):
    """x: (B, D) float32. params: output of prepare_params(). Returns (B, 1) f32."""
    w1, b1, w2, b2, w3, b3 = (
        params["w1"], params["b1"], params["w2"],
        params["b2"], params["w3"], params["b3"],
    )
    B, D = x.shape
    H1 = w1.shape[1]          # 128
    H2p = w2.shape[1]         # 128 (already padded)

    TB = _choose_batch_tile(B, block_b)
    num_tiles = pl.cdiv(B, TB)         # ragged last x block handled by Pallas (no pad)

    out = pl.pallas_call(
        _mlp_kernel,
        # Lane-dense output: one (1, TB) row per grid step.
        out_shape=jax.ShapeDtypeStruct((1, num_tiles * TB), jnp.float32),
        grid=(num_tiles,),
        in_specs=[
            # x streams through the auto double-buffered pipeline.
            # (If profiling shows exposed input DMA, pipeline_mode=pl.Buffered(3)
            #  on this spec is a cheap knob — VMEM headroom is huge.)
            pl.BlockSpec((TB, D), lambda i: (i, 0)),
            pl.BlockSpec((D, H1), lambda i: (0, 0)),     # w1: VMEM-resident
            pl.BlockSpec((1, H1), lambda i: (0, 0)),     # b1: resident
            pl.BlockSpec((H1, H2p), lambda i: (0, 0)),   # w2 (padded): resident
            pl.BlockSpec((1, H2p), lambda i: (0, 0)),    # b2 (padded): resident
            pl.BlockSpec((1, H2p), lambda i: (0, 0)),    # w3 row (padded): resident
            pl.BlockSpec(memory_space=pltpu.MemorySpace.SMEM),  # b3 scalar
        ],
        out_specs=pl.BlockSpec((1, TB), lambda i: (0, i)),
        compiler_params=pltpu.CompilerParams(
            dimension_semantics=("parallel",),           # megacore shard on v7x
        ),
    )(x, w1, b1, w2, b2, w3, b3)

    # Flattened tile order == batch order; drop the (< TB) garbage tail columns.
    return out.reshape(-1)[:B].reshape(B, 1)


def init_params(key, input_size):
    """Deterministic init mimicking PyTorch Linear default (uniform +/- 1/sqrt(fan_in)).

    Weights are stored transposed, i.e. (in, out), so the kernel computes x @ W + b.
    """
    def linear(key, fan_in, fan_out):
        kw, kb = jax.random.split(key)
        bound = 1.0 / jnp.sqrt(fan_in)
        w = jax.random.uniform(kw, (fan_in, fan_out), jnp.float32, -bound, bound)
        b = jax.random.uniform(kb, (fan_out,), jnp.float32, -bound, bound)
        return w, b

    k1, k2, k3 = jax.random.split(key, 3)
    w1, b1 = linear(k1, input_size, 128)
    w2, b2 = linear(k2, 128, 64)
    w3, b3 = linear(k3, 64, 1)
    return {"w1": w1, "b1": b1, "w2": w2, "b2": b2, "w3": w3, "b3": b3}


def _reference(x, p):
    h1 = jnp.maximum(x @ p["w1"] + p["b1"], 0.0)
    h2 = jnp.maximum(h1 @ p["w2"] + p["b2"], 0.0)
    return h2 @ p["w3"] + p["b3"]


if __name__ == "__main__":
    key = jax.random.PRNGKey(0)
    k_x, k_p = jax.random.split(key)

    batch, input_size = 8, 32
    x = jax.random.normal(k_x, (batch, input_size), jnp.float32)
    raw_params = init_params(k_p, input_size)
    ref = _reference(x, raw_params)

    # Exact f32 path: validates semantics vs. the PyTorch-equivalent reference.
    params_f32 = prepare_params(raw_params, jnp.float32)
    out = jax.block_until_ready(simple_model_forward(x, params_f32))
    assert out.shape == (batch, 1), out.shape
    assert jnp.allclose(out, ref, atol=1e-5, rtol=1e-5), "f32 mismatch vs reference"

    # bf16 fast path (recommended on v6e/v7x): same kernel, looser tolerance.
    params_bf16 = prepare_params(raw_params, jnp.bfloat16)
    out_bf16 = jax.block_until_ready(simple_model_forward(x, params_bf16))
    assert out_bf16.shape == (batch, 1), out_bf16.shape
    assert jnp.allclose(out_bf16, ref, atol=5e-2, rtol=5e-2), "bf16 mismatch vs reference"

    print("KERNEL_OK")
</pallas_src>

<mosaic_0001>
module attributes {stable_mosaic.version = 11 : i64} {
  func.func @_mlp_kernel(%arg0: i32, %arg1: memref<16x32xf32, #tpu.memory_space<vmem>>, %arg2: memref<32x128xf32, #tpu.memory_space<vmem>>, %arg3: memref<1x128xf32, #tpu.memory_space<vmem>>, %arg4: memref<128x128xf32, #tpu.memory_space<vmem>>, %arg5: memref<1x128xf32, #tpu.memory_space<vmem>>, %arg6: memref<1x128xf32, #tpu.memory_space<vmem>>, %arg7: memref<1xf32, #tpu.memory_space<smem>>, %arg8: memref<1x16xf32, #tpu.memory_space<vmem>>) attributes {dimension_semantics = [#tpu.dimension_semantics<parallel>], iteration_bounds = array<i64: 1>, scalar_prefetch = 0 : i64, scratch_operands = 0 : i64, tpu.core_type = #tpu.core_type<tc>, window_params = [{transform_indices = @transform_0, window_bounds = array<i64: 16, 32>}, {pipeline_mode = #tpu.pipeline_mode<synchronous>, transform_indices = @transform_1, window_bounds = array<i64: 32, 128>}, {pipeline_mode = #tpu.pipeline_mode<synchronous>, transform_indices = @transform_2, window_bounds = array<i64: 1, 128>}, {pipeline_mode = #tpu.pipeline_mode<synchronous>, transform_indices = @transform_3, window_bounds = array<i64: 128, 128>}, {pipeline_mode = #tpu.pipeline_mode<synchronous>, transform_indices = @transform_4, window_bounds = array<i64: 1, 128>}, {pipeline_mode = #tpu.pipeline_mode<synchronous>, transform_indices = @transform_5, window_bounds = array<i64: 1, 128>}, {transform_indices = @transform_6, window_bounds = array<i64: 1>}, {transform_indices = @transform_7, window_bounds = array<i64: 1, 16>}]} {
    %c0 = arith.constant 0 : index
    %c0_0 = arith.constant 0 : index
    %0 = vector.load %arg1[%c0, %c0_0] : memref<16x32xf32, #tpu.memory_space<vmem>>, vector<16x32xf32>
    %c0_1 = arith.constant 0 : index
    %c0_2 = arith.constant 0 : index
    %1 = vector.load %arg2[%c0_1, %c0_2] : memref<32x128xf32, #tpu.memory_space<vmem>>, vector<32x128xf32>
    %cst = arith.constant dense<0.000000e+00> : vector<16x128xf32>
    %2 = tpu.matmul %0, %1, %cst {dimension_numbers = #tpu.dot_dimension_numbers<[1], [0], [0], [1], [0, 0, 1, 1], [], []>} : vector<16x32xf32>, vector<32x128xf32>, vector<16x128xf32> -> vector<16x128xf32>
    %c0_3 = arith.constant 0 : index
    %c0_4 = arith.constant 0 : index
    %3 = vector.load %arg3[%c0_3, %c0_4] : memref<1x128xf32, #tpu.memory_space<vmem>>, vector<1x128xf32>
    %4 = vector.broadcast %3 : vector<1x128xf32> to vector<16x128xf32>
    %5 = arith.addf %2, %4 : vector<16x128xf32>
    %cst_5 = arith.constant 0.000000e+00 : f32
    %6 = vector.broadcast %cst_5 : f32 to vector<16x128xf32>
    %7 = arith.maximumf %5, %6 : vector<16x128xf32>
    %c0_6 = arith.constant 0 : index
    %c0_7 = arith.constant 0 : index
    %8 = vector.load %arg4[%c0_6, %c0_7] : memref<128x128xf32, #tpu.memory_space<vmem>>, vector<128x128xf32>
    %cst_8 = arith.constant dense<0.000000e+00> : vector<16x128xf32>
    %9 = tpu.matmul %7, %8, %cst_8 {dimension_numbers = #tpu.dot_dimension_numbers<[1], [0], [0], [1], [0, 0, 1, 1], [], []>} : vector<16x128xf32>, vector<128x128xf32>, vector<16x128xf32> -> vector<16x128xf32>
    %c0_9 = arith.constant 0 : index
    %c0_10 = arith.constant 0 : index
    %10 = vector.load %arg5[%c0_9, %c0_10] : memref<1x128xf32, #tpu.memory_space<vmem>>, vector<1x128xf32>
    %11 = vector.broadcast %10 : vector<1x128xf32> to vector<16x128xf32>
    %12 = arith.addf %9, %11 : vector<16x128xf32>
    %cst_11 = arith.constant 0.000000e+00 : f32
    %13 = vector.broadcast %cst_11 : f32 to vector<16x128xf32>
    %14 = arith.maximumf %12, %13 : vector<16x128xf32>
    %c0_12 = arith.constant 0 : index
    %c0_13 = arith.constant 0 : index
    %15 = vector.load %arg6[%c0_12, %c0_13] : memref<1x128xf32, #tpu.memory_space<vmem>>, vector<1x128xf32>
    %16 = vector.broadcast %15 : vector<1x128xf32> to vector<16x128xf32>
    %17 = arith.mulf %14, %16 : vector<16x128xf32>
    %cst_14 = arith.constant dense<0.000000e+00> : vector<16xf32>
    %18 = vector.multi_reduction <add>, %17, %cst_14 [1] : vector<16x128xf32> to vector<16xf32>
    %c0_15 = arith.constant 0 : index
    %19 = memref.load %arg7[%c0_15] : memref<1xf32, #tpu.memory_space<smem>>
    %20 = vector.broadcast %19 : f32 to vector<16xf32>
    %21 = arith.addf %18, %20 : vector<16xf32>
    %22 = vector.shape_cast %21 : vector<16xf32> to vector<1x16xf32>
    %c0_16 = arith.constant 0 : index
    %c0_17 = arith.constant 0 : index
    %23 = vector.load %arg8[%c0_16, %c0_17] : memref<1x16xf32, #tpu.memory_space<vmem>>, vector<1x16xf32>
    tpu.vector_store %arg8[%c0_16, %c0_17], %22 {strides = array<i32>} : memref<1x16xf32, #tpu.memory_space<vmem>>, vector<1x16xf32>,
    return
  }
  func.func @transform_0(%arg0: i32) -> (i32, i32) {
    %c0_i32 = arith.constant 0 : i32
    %c0_i32_0 = arith.constant 0 : i32
    return %arg0, %c0_i32 : i32, i32
  }
  func.func @transform_1(%arg0: i32) -> (i32, i32) {
    %c0_i32 = arith.constant 0 : i32
    %c0_i32_0 = arith.constant 0 : i32
    %c0_i32_1 = arith.constant 0 : i32
    return %c0_i32, %c0_i32_0 : i32, i32
  }
  func.func @transform_2(%arg0: i32) -> (i32, i32) {
    %c0_i32 = arith.constant 0 : i32
    %c0_i32_0 = arith.constant 0 : i32
    %c0_i32_1 = arith.constant 0 : i32
    return %c0_i32, %c0_i32_0 : i32, i32
  }
  func.func @transform_3(%arg0: i32) -> (i32, i32) {
    %c0_i32 = arith.constant 0 : i32
    %c0_i32_0 = arith.constant 0 : i32
    %c0_i32_1 = arith.constant 0 : i32
    return %c0_i32, %c0_i32_0 : i32, i32
  }
  func.func @transform_4(%arg0: i32) -> (i32, i32) {
    %c0_i32 = arith.constant 0 : i32
    %c0_i32_0 = arith.constant 0 : i32
    %c0_i32_1 = arith.constant 0 : i32
    return %c0_i32, %c0_i32_0 : i32, i32
  }
  func.func @transform_5(%arg0: i32) -> (i32, i32) {
    %c0_i32 = arith.constant 0 : i32
    %c0_i32_0 = arith.constant 0 : i32
    %c0_i32_1 = arith.constant 0 : i32
    return %c0_i32, %c0_i32_0 : i32, i32
  }
  func.func @transform_6(%arg0: i32) -> i32 {
    %c0_i32 = arith.constant 0 : i32
    %c0_i32_0 = arith.constant 0 : i32
    return %c0_i32 : i32
  }
  func.func @transform_7(%arg0: i32) -> (i32, i32) {
    %c0_i32 = arith.constant 0 : i32
    %c0_i32_0 = arith.constant 0 : i32
    return %c0_i32, %arg0 : i32, i32
  }
}

</mosaic_0001>

<llo_original>
// kernel: simple_model_forward.1
$region0: #{simple_model_forward.1}
  #allocation0 [shape = 'u32[]', space=smem, size = 0x4, offset = 0x4, fixed_abs, tag = 'smem constant byte address 0x4 - core index']
  #allocation1 [shape = 'u32[144,128]{1,0:T(1,128)}', space=vmem, size = 0x12000, scoped, tag = 'internal scratch']
  #allocation2 [shape = 'f32[1]{0:T(128)S(6)}', space=smem, size = 0x200, scoped, tag = 'scoped memory for simple_model_forward.1']
  %s0 = inlined_call_operand.hbm [shape: f32[8,32], index: 0, kind: input, shape index: {}]
  %s1 = inlined_call_operand.hbm [shape: f32[32,128], index: 1, kind: input, shape index: {}]
  %s2 = inlined_call_operand.vmem [shape: f32[1,128], index: 2, kind: input, shape index: {}]
  %s3 = inlined_call_operand.hbm [shape: f32[128,128], index: 3, kind: input, shape index: {}]
  %s4 = inlined_call_operand.vmem [shape: f32[1,128], index: 4, kind: input, shape index: {}]
  %s5 = inlined_call_operand.vmem [shape: f32[1,128], index: 5, kind: input, shape index: {}]
  %s6 = inlined_call_operand.<no memory space> [shape: f32[1], index: 6, kind: input, shape index: {}]
  %s7 = inlined_call_operand.vmem [shape: f32[1,16], index: 7, kind: output, shape index: {}]
  %s8 = sld [smem:[#allocation0]]
  $region50: #{simple_model_forward.1} parent=0
    _
  %s10 = ssub.s32 1, %s8
  %s11 = scalar_select 0, %s10, %s8
  %12 = sst [smem:[#allocation2]] %s6
  $region1: #{simple_model_forward.1} parent=0
    #allocation3 [shape = 'u8[8192]{0}', space=vmem, size = 0x2000, scoped, tag = 'input window, operand 0, single buffered']
    #allocation4 [shape = 's32[1]{0}', space=sflag, size = 0x4, scoped, tag = 'scoped memory for simple_model_forward.1']
    #allocation5 [shape = 'u8[16384]{0}', space=vmem, size = 0x4000, scoped, tag = 'input window, operand 1, single buffered']
    #allocation6 [shape = 's32[1]{0}', space=sflag, size = 0x4, scoped, tag = 'scoped memory for simple_model_forward.1']
    #allocation7 [shape = 'u8[65536]{0}', space=vmem, size = 0x10000, scoped, tag = 'input window, operand 3, single buffered']
    %13 = vsyncpa [#allocation4], 0
    %14 = vsyncpa [#allocation6], 0
    // Predicated region
    $region2: #{simple_model_forward.1} parent=1 // pred_check
      _
    $region3: #{simple_model_forward.1} parent=1 // pred_check_branch
      %16 = sbr.rel (0) target = $region5
    $region4: #{simple_model_forward.1} parent=1 // pred_region
      %s18 = ssub.s32 256, 128
      %19 = vsyncadd [#allocation4], %s18
      %s20 = sshll.u32 [#allocation3], 4
      %s21 = int_to_ptr.vmem [resolvable:$true] %s20
      %26 = dma.hbm_to_vmem [thread:$0]  %s0, 128, %s21, [#allocation4], 128, 128, 8
    $region5: #{simple_model_forward.1} parent=1 // pred_fallthru
      _
    // Predicated region
    $region6: #{simple_model_forward.1} parent=1 // pred_check
      _
    $region7: #{simple_model_forward.1} parent=1 // pred_check_branch
      %28 = sbr.rel (0) target = $region9
    $region8: #{simple_model_forward.1} parent=1 // pred_region
      %s30 = ssub.s32 512, 512
      %31 = vsyncadd [#allocation6], %s30
      %s32 = sshll.u32 [#allocation5], 4
      %s33 = int_to_ptr.vmem [resolvable:$true] %s32
      %38 = dma.hbm_to_vmem [thread:$0]  %s1, 512, %s33, [#allocation6], 128, 128, 8
    $region9: #{simple_model_forward.1} parent=1 // pred_fallthru
      _
    // Predicated region
    $region10: #{simple_model_forward.1} parent=1 // pred_check
      _
    $region11: #{simple_model_forward.1} parent=1 // pred_check_branch
      %40 = sbr.rel (0) target = $region13
    $region12: #{simple_model_forward.1} parent=1 // pred_region
      _
    $region13: #{simple_model_forward.1} parent=1 // pred_fallthru
      _
    // Predicated region
    $region14: #{simple_model_forward.1} parent=1 // pred_check
      _
    $region15: #{simple_model_forward.1} parent=1 // pred_check_branch
      %42 = sbr.rel (0) target = $region17
    $region16: #{simple_model_forward.1} parent=1 // pred_region
      %s44 = ssub.s32 2048, 2048
      %45 = vsyncadd [#allocation6], %s44
      %s46 = sshll.u32 [#allocation7], 4
      %s47 = int_to_ptr.vmem [resolvable:$true] %s46
      %52 = dma.hbm_to_vmem [thread:$0]  %s3, 2048, %s47, [#allocation6], 128, 128, 8
    $region17: #{simple_model_forward.1} parent=1 // pred_fallthru
      _
    // Predicated region
    $region18: #{simple_model_forward.1} parent=1 // pred_check
      _
    $region19: #{simple_model_forward.1} parent=1 // pred_check_branch
      %54 = sbr.rel (0) target = $region21
    $region20: #{simple_model_forward.1} parent=1 // pred_region
      _
    $region21: #{simple_model_forward.1} parent=1 // pred_fallthru
      _
    // Predicated region
    $region22: #{simple_model_forward.1} parent=1 // pred_check
      _
    $region23: #{simple_model_forward.1} parent=1 // pred_check_branch
      %56 = sbr.rel (0) target = $region25
    $region24: #{simple_model_forward.1} parent=1 // pred_region
      _
    $region25: #{simple_model_forward.1} parent=1 // pred_fallthru
      _
    // Predicated region
    $region26: #{simple_model_forward.1} parent=1 // pred_check
      _
    $region27: #{simple_model_forward.1} parent=1 // pred_check_branch
      %58 = sbr.rel (0) target = $region29
    $region28: #{simple_model_forward.1} parent=1 // pred_region
      _
    $region29: #{simple_model_forward.1} parent=1 // pred_fallthru
      _
    // Predicated region
    $region30: #{simple_model_forward.1} parent=1 // pred_check
      _
    $region31: #{simple_model_forward.1} parent=1 // pred_check_branch
      %60 = sbr.rel (0) target = $region33
    $region32: #{simple_model_forward.1} parent=1 // pred_region
      %61 = dma.done [#allocation4], 256
    $region33: #{simple_model_forward.1} parent=1 // pred_fallthru
      _
    // Predicated region
    $region34: #{simple_model_forward.1} parent=1 // pred_check
      _
    $region35: #{simple_model_forward.1} parent=1 // pred_check_branch
      %63 = sbr.rel (0) target = $region37
    $region36: #{simple_model_forward.1} parent=1 // pred_region
      %64 = dma.done [#allocation6], 512
    $region37: #{simple_model_forward.1} parent=1 // pred_fallthru
      _
    // Predicated region
    $region38: #{simple_model_forward.1} parent=1 // pred_check
      _
    $region39: #{simple_model_forward.1} parent=1 // pred_check_branch
      %66 = sbr.rel (0) target = $region41
    $region40: #{simple_model_forward.1} parent=1 // pred_region
      %67 = dma.done [#allocation6], 2048
    $region41: #{simple_model_forward.1} parent=1 // pred_fallthru
      _
    %v68 = vld [vmem:[#allocation3] sm:$0xff]
    %v69 = vld [vmem:[#allocation3 + $0x8] sm:$0xff]
    %v70 = vld [vmem:[#allocation5] sm:$0xff]
    %v71 = vld [vmem:[#allocation5 + $0x8] sm:$0xff]
    %v72 = vld [vmem:[#allocation5 + $0x10] sm:$0xff]
    %v73 = vld [vmem:[#allocation5 + $0x18] sm:$0xff]
    %v74 = vld [vmem:[%s2] sm:$0x1]
    %v76 = vlaneseq
    %v77 = vshrl.u32 %v76, 7
    %v78 = vsub.s32 0, %v77
    %v79 = vrot.slane %v74, %v78
    %vm81 = vcmask 261120
    %v83 = vsel %vm81, %v68, 0
    %v86 = vsel %vm81, %v69, 0
    %88 = vmatprep.subr.mxu0 0.0
    %89 = vmatpush1.msra.mxu0 %v70
    %90 = vmatprep.subr.mxu0 0.0
    %91 = vmatpush1.msra.mxu0 %v71
    %92 = vmatprep.subr.mxu0 0.0
    %93 = vmatpush1.msra.mxu0 %v72
    %94 = vmatprep.subr.mxu0 0.0
    %95 = vmatpush1.msra.mxu0 %v73
    %96 = vmatprep.subr.mxu0 0.0
    %97 = vmatpush1.msra.mxu0 0.0
    %98 = vmatprep.subr.mxu0 0.0
    %99 = vmatpush1.msra.mxu0 0.0
    %100 = vmatprep.subr.mxu0 0.0
    %101 = vmatpush1.msra.mxu0 0.0
    %102 = vmatprep.subr.mxu0 0.0
    %103 = vmatpush1.msra.mxu0 0.0
    %104 = vmatprep.subr.mxu0 0.0
    %105 = vmatpush1.msra.mxu0 0.0
    %106 = vmatprep.subr.mxu0 0.0
    %107 = vmatpush1.msra.mxu0 0.0
    %108 = vmatprep.subr.mxu0 0.0
    %109 = vmatpush1.msra.mxu0 0.0
    %110 = vmatprep.subr.mxu0 0.0
    %111 = vmatpush1.msra.mxu0 0.0
    %112 = vmatprep.subr.mxu0 0.0
    %113 = vmatpush1.msra.mxu0 0.0
    %114 = vmatprep.subr.mxu0 0.0
    %115 = vmatpush1.msra.mxu0 0.0
    %116 = vmatprep.subr.mxu0 0.0
    %117 = vmatpush1.msra.mxu0 0.0
    %118 = vmatprep.subr.mxu0 0.0
    %119 = vmatpush1.msra.mxu0 0.0
    %120 = vmatprep.subr.mxu0 0.0
    %121 = vmatpush1.msra.mxu0 0.0
    %122 = vmatprep.subr.mxu0 0.0
    %123 = vmatpush1.msra.mxu0 0.0
    %124 = vmatprep.subr.mxu0 0.0
    %125 = vmatpush1.msra.mxu0 0.0
    %126 = vmatprep.subr.mxu0 0.0
    %127 = vmatpush1.msra.mxu0 0.0
    %128 = vmatprep.subr.mxu0 0.0
    %129 = vmatpush1.msra.mxu0 0.0
    %130 = vmatprep.subr.mxu0 0.0
    %131 = vmatpush1.msra.mxu0 0.0
    %132 = vmatprep.subr.mxu0 0.0
    %133 = vmatpush1.msra.mxu0 0.0
    %134 = vmatprep.subr.mxu0 0.0
    %135 = vmatpush1.msra.mxu0 0.0
    %136 = vmatprep.subr.mxu0 0.0
    %137 = vmatpush1.msra.mxu0 0.0
    %138 = vmatprep.subr.mxu0 0.0
    %139 = vmatpush1.msra.mxu0 0.0
    %140 = vmatprep.subr.mxu0 0.0
    %141 = vmatpush1.msra.mxu0 0.0
    %142 = vmatprep.subr.mxu0 0.0
    %143 = vmatpush1.msra.mxu0 0.0
    %144 = vmatprep.subr.mxu0 0.0
    %145 = vmatpush1.msra.mxu0 0.0
    %146 = vmatprep.subr.mxu0 0.0
    %147 = vmatpush1.msra.mxu0 0.0
    %148 = vmatprep.subr.mxu0 0.0
    %149 = vmatpush1.msra.mxu0 0.0
    %150 = vmatprep.subr.mxu0 0.0
    %151 = vmatpush1.msra.mxu0 0.0
    %152 = vmatprep.mubr.f32.mxu0 0.0
    %153 = vmatmul.mubr.f32.gmra.mrb[0].mxu0 %v83
    %v154 = vpop.f32.mrb[0].mxu0
    %v155 = vadd.f32 %v79, %v154
    %v156 = vpop.f32.mrb[0].mxu0
    %157 = vmatprep.mubr.f32.mxu0 0.0
    %158 = vmatmul.mubr.f32.gmra.mrb[0].mxu0 %v86
    %v159 = vpop.f32.mrb[0].mxu0
    %v160 = vadd.f32 %v79, %v159
    %v161 = vpop.f32.mrb[0].mxu0
    %162 = vdwg.mxu0
    %v163 = vmax.f32 %v155, 0.0
    %v164 = vmax.f32 %v160, 0.0
    %v165 = vld [vmem:[#allocation7] sm:$0xff]
    %v166 = vld [vmem:[#allocation7 + $0x8] sm:$0xff]
    %v167 = vld [vmem:[#allocation7 + $0x10] sm:$0xff]
    %v168 = vld [vmem:[#allocation7 + $0x18] sm:$0xff]
    %v169 = vld [vmem:[#allocation7 + $0x20] sm:$0xff]
    %v170 = vld [vmem:[#allocation7 + $0x28] sm:$0xff]
    %v171 = vld [vmem:[#allocation7 + $0x30] sm:$0xff]
    %v172 = vld [vmem:[#allocation7 + $0x38] sm:$0xff]
    %v173 = vld [vmem:[#allocation7 + $0x40] sm:$0xff]
    %v174 = vld [vmem:[#allocation7 + $0x48] sm:$0xff]
    %v175 = vld [vmem:[#allocation7 + $0x50] sm:$0xff]
    %v176 = vld [vmem:[#allocation7 + $0x58] sm:$0xff]
    %v177 = vld [vmem:[#allocation7 + $0x60] sm:$0xff]
    %v178 = vld [vmem:[#allocation7 + $0x68] sm:$0xff]
    %v179 = vld [vmem:[#allocation7 + $0x70] sm:$0xff]
    %v180 = vld [vmem:[#allocation7 + $0x78] sm:$0xff]
    %v181 = vld [vmem:[%s4] sm:$0x1]
    %v183 = vlaneseq
    %v184 = vshrl.u32 %v183, 7
    %v185 = vsub.s32 0, %v184
    %v186 = vrot.slane %v181, %v185
    %188 = vmatprep.subr.mxu0 0.0
    %189 = vmatpush1.msra.mxu0 %v165
    %190 = vmatprep.subr.mxu0 0.0
    %191 = vmatpush1.msra.mxu0 %v166
    %192 = vmatprep.subr.mxu0 0.0
    %193 = vmatpush1.msra.mxu0 %v167
    %194 = vmatprep.subr.mxu0 0.0
    %195 = vmatpush1.msra.mxu0 %v168
    %196 = vmatprep.subr.mxu0 0.0
    %197 = vmatpush1.msra.mxu0 %v169
    %198 = vmatprep.subr.mxu0 0.0
    %199 = vmatpush1.msra.mxu0 %v170
    %200 = vmatprep.subr.mxu0 0.0
    %201 = vmatpush1.msra.mxu0 %v171
    %202 = vmatprep.subr.mxu0 0.0
    %203 = vmatpush1.msra.mxu0 %v172
    %204 = vmatprep.subr.mxu0 0.0
    %205 = vmatpush1.msra.mxu0 %v173
    %206 = vmatprep.subr.mxu0 0.0
    %207 = vmatpush1.msra.mxu0 %v174
    %208 = vmatprep.subr.mxu0 0.0
    %209 = vmatpush1.msra.mxu0 %v175
    %210 = vmatprep.subr.mxu0 0.0
    %211 = vmatpush1.msra.mxu0 %v176
    %212 = vmatprep.subr.mxu0 0.0
    %213 = vmatpush1.msra.mxu0 %v177
    %214 = vmatprep.subr.mxu0 0.0
    %215 = vmatpush1.msra.mxu0 %v178
    %216 = vmatprep.subr.mxu0 0.0
    %217 = vmatpush1.msra.mxu0 %v179
    %218 = vmatprep.subr.mxu0 0.0
    %219 = vmatpush1.msra.mxu0 %v180
    %220 = vmatprep.subr.mxu0 0.0
    %221 = vmatpush1.msra.mxu0 0.0
    %222 = vmatprep.subr.mxu0 0.0
    %223 = vmatpush1.msra.mxu0 0.0
    %224 = vmatprep.subr.mxu0 0.0
    %225 = vmatpush1.msra.mxu0 0.0
    %226 = vmatprep.subr.mxu0 0.0
    %227 = vmatpush1.msra.mxu0 0.0
    %228 = vmatprep.subr.mxu0 0.0
    %229 = vmatpush1.msra.mxu0 0.0
    %230 = vmatprep.subr.mxu0 0.0
    %231 = vmatpush1.msra.mxu0 0.0
    %232 = vmatprep.subr.mxu0 0.0
    %233 = vmatpush1.msra.mxu0 0.0
    %234 = vmatprep.subr.mxu0 0.0
    %235 = vmatpush1.msra.mxu0 0.0
    %236 = vmatprep.subr.mxu0 0.0
    %237 = vmatpush1.msra.mxu0 0.0
    %238 = vmatprep.subr.mxu0 0.0
    %239 = vmatpush1.msra.mxu0 0.0
    %240 = vmatprep.subr.mxu0 0.0
    %241 = vmatpush1.msra.mxu0 0.0
    %242 = vmatprep.subr.mxu0 0.0
    %243 = vmatpush1.msra.mxu0 0.0
    %244 = vmatprep.subr.mxu0 0.0
    %245 = vmatpush1.msra.mxu0 0.0
    %246 = vmatprep.subr.mxu0 0.0
    %247 = vmatpush1.msra.mxu0 0.0
    %248 = vmatprep.subr.mxu0 0.0
    %249 = vmatpush1.msra.mxu0 0.0
    %250 = vmatprep.subr.mxu0 0.0
    %251 = vmatpush1.msra.mxu0 0.0
    %252 = vmatprep.mubr.f32.mxu0 0.0
    %253 = vmatmul.mubr.f32.gmra.mrb[0].mxu0 %v163
    %v254 = vpop.f32.mrb[0].mxu0
    %v255 = vadd.f32 %v186, %v254
    %v256 = vpop.f32.mrb[0].mxu0
    %257 = vmatprep.mubr.f32.mxu0 0.0
    %258 = vmatmul.mubr.f32.gmra.mrb[0].mxu0 %v164
    %v259 = vpop.f32.mrb[0].mxu0
    %v260 = vadd.f32 %v186, %v259
    %v261 = vpop.f32.mrb[0].mxu0
    %262 = vdwg.mxu0
    %v263 = vmax.f32 %v255, 0.0
    %v264 = vmax.f32 %v260, 0.0
    %v265 = vld [vmem:[%s5] sm:$0x1]
    %v267 = vlaneseq
    %v268 = vshrl.u32 %v267, 7
    %v269 = vsub.s32 0, %v268
    %v270 = vrot.slane %v265, %v269
    %v272 = vmul.f32 %v263, %v270
    %v273 = vmul.f32 %v264, %v270
    %274 = vadd.xlane.f32.xlu0 %v272
    %v275 = vpop.xlane.xlu0 %274
    %276 = vadd.xlane.f32.xlu0 %v273
    %v277 = vpop.xlane.xlu0 %276
    %s278 = sld [smem:[#allocation2]]
    %v279 = vstv %s278
    %v280 = vadd.f32 %v275, %v279
    %v281 = vadd.f32 %v277, %v279
    %v284 = vlaneseq
    %v285 = vand.u32 %v284, 127
    %v286 = vlaneseq
    %v287 = vshrl.u32 %v286, 7
    %v288 = vsub.s32 %v285, %v287
    %v289 = vrot.slane %v280, %v288
    %v290 = vadd.s32 %v285, 4294967288
    %v291 = vlaneseq
    %v292 = vshrl.u32 %v291, 7
    %v293 = vsub.s32 %v290, %v292
    %v294 = vrot.slane %v281, %v293
    %vm295 = vcmask 130112
    %v296 = vsel %vm295, %v294, %v289
    %vm298 = vcmask 122880
    %299 = vst.msk [vmem:[%s7] sm:$0x1] %vm298, %v296
    // Predicated region
    $region42: #{simple_model_forward.1} parent=1 // pred_check
      _
    $region43: #{simple_model_forward.1} parent=1 // pred_check_branch
      %301 = sbr.rel (0) target = $region45
    $region44: #{simple_model_forward.1} parent=1 // pred_region
      _
    $region45: #{simple_model_forward.1} parent=1 // pred_fallthru
      _
    // Predicated region
    $region46: #{simple_model_forward.1} parent=1 // pred_check
      _
    $region47: #{simple_model_forward.1} parent=1 // pred_check_branch
      %303 = sbr.rel (0) target = $region49
    $region48: #{simple_model_forward.1} parent=1 // pred_region
      _
    $region49: #{simple_model_forward.1} parent=1 // pred_fallthru
      _
    %304 = vsyncpa [#allocation4], 1
    %305 = vsyncpa [#allocation6], 1

</llo_original>
